<compile_context>
chip_gen: v7x
topology: tpu7x:2x2x1
jax: 0.10.0
libtpu: 0.0.40
codegen_flags: <defaults>
</compile_context>

<pallas_src>
import functools

import jax
import jax.numpy as jnp
from jax.experimental import pallas as pl
from jax.experimental.pallas import tpu as pltpu


def _focal_loss_kernel(logits_ref, target_ref, out_ref, *,
                       gamma, n, tile_rows, exp_in_bf16):
    """Processes one batch tile; writes the tile's (masked) loss *sum*."""
    i = pl.program_id(0)

    x = logits_ref[...]                        # (TN, C), native dtype
    t = target_ref[...]                        # (TN, 1), int32

    # Numerically stable softmax statistics over the class (lane) axis.
    # Max is exact in the input dtype; exp/sum accumulate in f32.
    m = jnp.max(x, axis=-1, keepdims=True).astype(jnp.float32)        # (TN, 1)
    shifted = x.astype(jnp.float32) - m                               # (TN, C)
    if exp_in_bf16:
        # Optional EUP-throughput path (v6e/v7x only; no bf16 EUP on v5e).
        e = jnp.exp(shifted.astype(jnp.bfloat16))
        sumexp = jnp.sum(e, axis=-1, keepdims=True, dtype=jnp.float32)
    else:
        e = jnp.exp(shifted)
        sumexp = jnp.sum(e, axis=-1, keepdims=True)                   # (TN, 1)

    # One-hot gather of the target logit (VPU compare/select + XLU reduce).
    # Done in the input dtype: exactly one nonzero per row, so the sum is
    # exact; only the (TN,1) result is widened to f32.
    cols = jax.lax.broadcasted_iota(jnp.int32, x.shape, 1)            # (TN, C)
    tgt_logit = jnp.sum(
        jnp.where(cols == t, x, 0.0),
        axis=-1, keepdims=True).astype(jnp.float32)                   # (TN, 1)

    logp = jnp.log(sumexp) + m - tgt_logit     # per-sample CE, (TN, 1)

    if gamma == 0.0:
        # Focal weight is exactly 1; skip all extra transcendentals and the
        # 0**0 hazard entirely.
        loss = logp
    else:
        # p = exp(-logp) rewritten to reuse m / sumexp; divide -> EUP recip.
        p = jnp.exp(tgt_logit - m) * pl.reciprocal(sumexp, approx=True)
        # Clamp guards the rounding case p > 1 (reference would NaN for
        # non-integer gamma); intended divergence.
        base = jnp.maximum(1.0 - p, 0.0)
        if float(gamma).is_integer() and 1 <= gamma <= 8:
            w = base
            for _ in range(int(gamma) - 1):    # repeated multiply, no jnp.power
                w = w * base
        else:
            w = jnp.power(base, jnp.float32(gamma))
        loss = w * logp

    # Row-validity mask only when the last tile is actually partial.
    if n % tile_rows != 0:
        rows = jax.lax.broadcasted_iota(jnp.int32, (tile_rows, 1), 0)
        valid = (i * tile_rows + rows) < n     # (TN, 1) bool
        loss = jnp.where(valid, loss, 0.0)

    out_ref[...] = jnp.sum(loss).reshape(1, 1, 1).astype(jnp.float32)


def _vmem_capacity_bytes():
    """Per-core VMEM capacity; conservative fallback if the query fails."""
    try:
        return int(pltpu.get_tpu_info().vmem_capacity_bytes)
    except Exception:
        return 64 << 20                        # v7x per-TC (smallest in fleet)


def _per_row_vmem_bytes(c, itemsize):
    """VMEM bytes per logits row: double-buffered input tile, f32 temporaries
    (x_f32, shifted, e, col iota), the one-hot select in input dtype, and the
    lane-padded (tn,1) int32 target block (128 lanes) double-buffered."""
    return c * (3 * itemsize + 16) + 2 * 128 * 4


def _pick_tile_rows(n, c, itemsize, tile_budget):
    """Rows per tile from the VMEM byte budget; multiple of 8, no small cap."""
    per_row = _per_row_vmem_bytes(c, itemsize)
    tn = tile_budget // max(1, per_row)
    tn = max(8, (tn // 8) * 8)
    tn = min(tn, 16384)                        # way past the roofline plateau
    if n <= tn:
        # Keep >= 2 tiles for large inputs so both v7x TensorCores get work.
        if n >= 16 and n * c * itemsize > (4 << 20):
            tn = max(8, ((pl.cdiv(n, 2) + 7) // 8) * 8)
        else:
            tn = n                             # single tile == full batch dim
    return tn


def focal_loss(logits, target, gamma=0.0, *, tile_rows=None,
               compute_dtype=None, exp_in_bf16=False, core_parallel=False):
    """logits: (N, C) float, target: (N,) int class indices in [0, C).
    Returns the scalar mean focal loss.

    compute_dtype: optionally cast logits (e.g. jnp.bfloat16) before the call;
        halves HBM traffic for this HBM-bound kernel at a precision cost.
    exp_in_bf16: optional EUP-throughput path (v6e/v7x only), off by default.
    core_parallel: use pltpu.CORE_PARALLEL dimension semantics (v7x 2-TC
        sharding); off by default for portability.
    """
    if compute_dtype is not None:
        logits = logits.astype(compute_dtype)
    n, c = logits.shape
    target_2d = target.astype(jnp.int32).reshape(n, 1)
    itemsize = jnp.dtype(logits.dtype).itemsize

    # Per-generation VMEM budgeting: ~48 MiB usable on v7x, ~96 MiB on v5e/v6e.
    vmem_cap = _vmem_capacity_bytes()
    vmem_ceiling = int(0.75 * vmem_cap)
    tile_budget = max(2 << 20, vmem_ceiling - (6 << 20))

    if tile_rows is None:
        tn = _pick_tile_rows(n, c, itemsize, tile_budget)
    else:
        tn = min(int(tile_rows), n)
        if tn < n and tn % 8 != 0:
            tn = max(8, (tn // 8) * 8)
    num_tiles = pl.cdiv(n, tn)

    vmem_needed = _per_row_vmem_bytes(c, itemsize) * tn + (6 << 20)
    vmem_limit = int(min(max(vmem_needed, 32 << 20), vmem_ceiling))

    kernel = functools.partial(
        _focal_loss_kernel, gamma=float(gamma), n=n, tile_rows=tn,
        exp_in_bf16=bool(exp_in_bf16))

    semantics = (pltpu.CORE_PARALLEL,) if core_parallel else ("parallel",)

    # Per-tile partial sums; each grid step owns its own output block so the
    # batch axis can be sharded across TensorCores.
    partial_sums = pl.pallas_call(
        kernel,
        out_shape=jax.ShapeDtypeStruct((num_tiles, 1, 1), jnp.float32),
        grid=(num_tiles,),
        in_specs=[
            pl.BlockSpec((tn, c), lambda i: (i, 0)),
            pl.BlockSpec((tn, 1), lambda i: (i, 0)),
        ],
        out_specs=pl.BlockSpec((1, 1, 1), lambda i: (i, 0, 0)),
        compiler_params=pltpu.CompilerParams(
            dimension_semantics=semantics,
            vmem_limit_bytes=vmem_limit,
        ),
    )(logits, target_2d)

    # Final reduce over num_tiles scalars is negligible; divide by the true N.
    return jnp.sum(partial_sums) / jnp.float32(n)


def _focal_loss_ref(logits, target, gamma=0.0):
    x = logits.astype(jnp.float32)
    lse = jax.scipy.special.logsumexp(x, axis=-1)
    tgt = jnp.take_along_axis(x, target[:, None].astype(jnp.int32), axis=-1)[:, 0]
    logp = lse - tgt
    p = jnp.exp(-logp)
    if gamma == 0.0:
        w = jnp.ones_like(p)
    else:
        w = jnp.power(1.0 - p, gamma)
    return jnp.mean(w * logp)


if __name__ == "__main__":
    key = jax.random.PRNGKey(0)
    k1, k2, k3, k4, k5, k6 = jax.random.split(key, 6)

    # Test 1: module-default config (gamma=0) at a small shape (single tile).
    N1, C1 = 8, 16
    logits1 = jax.random.normal(k1, (N1, C1), dtype=jnp.float32)
    target1 = jax.random.randint(k2, (N1,), 0, C1, dtype=jnp.int32)
    out1 = jax.block_until_ready(focal_loss(logits1, target1, gamma=0.0))
    ref1 = _focal_loss_ref(logits1, target1, gamma=0.0)
    assert jnp.allclose(out1, ref1, atol=1e-5, rtol=1e-5), (out1, ref1)

    # Test 2: exercises the batch grid, partial-tile masking, gamma != 0 and
    # the approx-reciprocal p path (hence the slightly looser tolerance).
    N2, C2 = 20, 128
    logits2 = jax.random.normal(k3, (N2, C2), dtype=jnp.float32)
    target2 = jax.random.randint(k4, (N2,), 0, C2, dtype=jnp.int32)
    out2 = jax.block_until_ready(focal_loss(logits2, target2, gamma=2.0, tile_rows=8))
    ref2 = _focal_loss_ref(logits2, target2, gamma=2.0)
    assert jnp.allclose(out2, ref2, atol=1e-3, rtol=1e-3), (out2, ref2)

    # Test 3: bf16 logits path (input-dtype one-hot gather) + non-integer gamma.
    N3, C3 = 24, 64
    logits3 = jax.random.normal(k5, (N3, C3), dtype=jnp.float32).astype(jnp.bfloat16)
    target3 = jax.random.randint(k6, (N3,), 0, C3, dtype=jnp.int32)
    out3 = jax.block_until_ready(focal_loss(logits3, target3, gamma=1.5))
    ref3 = _focal_loss_ref(logits3, target3, gamma=1.5)   # ref on same bf16 values
    assert jnp.allclose(out3, ref3, atol=1e-3, rtol=1e-3), (out3, ref3)

    print("KERNEL_OK")
</pallas_src>

<mosaic_0001>
module attributes {stable_mosaic.version = 11 : i64} {
  func.func @_focal_loss_kernel(%arg0: i32, %arg1: memref<8x16xf32, #tpu.memory_space<vmem>>, %arg2: memref<8x1xi32, #tpu.memory_space<vmem>>, %arg3: memref<1x1x1xf32, #tpu.memory_space<vmem>>) attributes {dimension_semantics = [#tpu.dimension_semantics<parallel>], iteration_bounds = array<i64: 1>, scalar_prefetch = 0 : i64, scratch_operands = 0 : i64, tpu.core_type = #tpu.core_type<tc>, window_params = [{transform_indices = @transform_0, window_bounds = array<i64: 8, 16>}, {transform_indices = @transform_1, window_bounds = array<i64: 8, 1>}, {transform_indices = @transform_2, window_bounds = array<i64: 1, 1, 1>}]} {
    %c0 = arith.constant 0 : index
    %c0_0 = arith.constant 0 : index
    %0 = vector.load %arg1[%c0, %c0_0] : memref<8x16xf32, #tpu.memory_space<vmem>>, vector<8x16xf32>
    %c0_1 = arith.constant 0 : index
    %c0_2 = arith.constant 0 : index
    %1 = vector.load %arg2[%c0_1, %c0_2] : memref<8x1xi32, #tpu.memory_space<vmem>>, vector<8x1xi32>
    %cst = arith.constant dense<0xFF800000> : vector<8xf32>
    %2 = vector.multi_reduction <maximumf>, %0, %cst [1] : vector<8x16xf32> to vector<8xf32>
    %3 = vector.shape_cast %2 : vector<8xf32> to vector<8x1xf32>
    %4 = vector.broadcast %3 : vector<8x1xf32> to vector<8x16xf32>
    %5 = arith.subf %0, %4 : vector<8x16xf32>
    %6 = math.exp %5 : vector<8x16xf32>
    %cst_3 = arith.constant dense<0.000000e+00> : vector<8xf32>
    %7 = vector.multi_reduction <add>, %6, %cst_3 [1] : vector<8x16xf32> to vector<8xf32>
    %8 = vector.shape_cast %7 : vector<8xf32> to vector<8x1xf32>
    %9 = tpu.iota {dimensions = array<i32: 1>} : vector<8x16xi32>
    %10 = vector.broadcast %1 : vector<8x1xi32> to vector<8x16xi32>
    %11 = arith.cmpi eq, %9, %10 : vector<8x16xi32>
    %cst_4 = arith.constant 0.000000e+00 : f32
    %12 = vector.broadcast %cst_4 : f32 to vector<8x16xf32>
    %13 = arith.select %11, %0, %12 : vector<8x16xi1>, vector<8x16xf32>
    %cst_5 = arith.constant dense<0.000000e+00> : vector<8xf32>
    %14 = vector.multi_reduction <add>, %13, %cst_5 [1] : vector<8x16xf32> to vector<8xf32>
    %15 = vector.shape_cast %14 : vector<8xf32> to vector<8x1xf32>
    %16 = math.log %8 : vector<8x1xf32>
    %17 = arith.addf %16, %3 : vector<8x1xf32>
    %18 = arith.subf %17, %15 : vector<8x1xf32>
    %19 = vector.shape_cast %18 : vector<8x1xf32> to vector<1x8x1xf32>
    %cst_6 = arith.constant dense<0.000000e+00> : vector<1xf32>
    %20 = vector.multi_reduction <add>, %19, %cst_6 [1, 2] : vector<1x8x1xf32> to vector<1xf32>
    %21 = vector.shape_cast %20 : vector<1xf32> to vector<1x1x1xf32>
    %22 = vector.extract %21[0, 0, 0] : f32 from vector<1x1x1xf32>
    %23 = vector.broadcast %22 : f32 to vector<1x1x1xf32>
    %c0_7 = arith.constant 0 : index
    %c0_8 = arith.constant 0 : index
    %c0_9 = arith.constant 0 : index
    %24 = vector.load %arg3[%c0_7, %c0_8, %c0_9] : memref<1x1x1xf32, #tpu.memory_space<vmem>>, vector<1x1x1xf32>
    tpu.vector_store %arg3[%c0_7, %c0_8, %c0_9], %23 {strides = array<i32>} : memref<1x1x1xf32, #tpu.memory_space<vmem>>, vector<1x1x1xf32>,
    return
  }
  func.func @transform_0(%arg0: i32) -> (i32, i32) {
    %c0_i32 = arith.constant 0 : i32
    %c0_i32_0 = arith.constant 0 : i32
    return %arg0, %c0_i32 : i32, i32
  }
  func.func @transform_1(%arg0: i32) -> (i32, i32) {
    %c0_i32 = arith.constant 0 : i32
    %c0_i32_0 = arith.constant 0 : i32
    return %arg0, %c0_i32 : i32, i32
  }
  func.func @transform_2(%arg0: i32) -> (i32, i32, i32) {
    %c0_i32 = arith.constant 0 : i32
    %c0_i32_0 = arith.constant 0 : i32
    %c0_i32_1 = arith.constant 0 : i32
    return %arg0, %c0_i32, %c0_i32_0 : i32, i32, i32
  }
}

</mosaic_0001>

<llo_original>
// kernel: tpu_custom_call.1
$region0: #{tpu_custom_call.1}
  #allocation0 [shape = 'u32[]', space=smem, size = 0x4, offset = 0x4, fixed_abs, tag = 'smem constant byte address 0x4 - core index']
  #allocation1 [shape = 'u32[144,128]{1,0:T(1,128)}', space=vmem, size = 0x12000, scoped, tag = 'internal scratch']
  %s0 = inlined_call_operand.vmem [shape: f32[8,16], index: 0, kind: input, shape index: {}]
  %s1 = inlined_call_operand.vmem [shape: s32[8,1], index: 1, kind: input, shape index: {}]
  %s2 = inlined_call_operand.hbm [shape: f32[1,1,1], index: 2, kind: output, shape index: {}]
  %s3 = sld [smem:[#allocation0]]
  $region18: #{tpu_custom_call.1} parent=0
    _
  %s5 = ssub.s32 1, %s3
  %s6 = scalar_select 0, %s5, %s3
  $region1: #{tpu_custom_call.1} parent=0
    #allocation2 [shape = 'u8[512]{0}', space=vmem, size = 0x400, scoped, tag = 'output window, operand 0, single buffered']
    #allocation3 [shape = 's32[1]{0}', space=sflag, size = 0x4, scoped, tag = 'scoped memory for tpu_custom_call.1']
    %7 = vsyncpa [#allocation3], 0
    // Predicated region
    $region2: #{tpu_custom_call.1} parent=1 // pred_check
      _
    $region3: #{tpu_custom_call.1} parent=1 // pred_check_branch
      %9 = sbr.rel (0) target = $region5
    $region4: #{tpu_custom_call.1} parent=1 // pred_region
      _
    $region5: #{tpu_custom_call.1} parent=1 // pred_fallthru
      _
    // Predicated region
    $region6: #{tpu_custom_call.1} parent=1 // pred_check
      _
    $region7: #{tpu_custom_call.1} parent=1 // pred_check_branch
      %11 = sbr.rel (0) target = $region9
    $region8: #{tpu_custom_call.1} parent=1 // pred_region
      _
    $region9: #{tpu_custom_call.1} parent=1 // pred_fallthru
      _
    %v12 = vld [vmem:[%s0] sm:$0xff]
    %v13 = vld [vmem:[%s1] sm:$0xff]
    %vm14 = vcmask 130048
    %v15 = vsel %vm14, %v12, -inf
    %16 = vmax.xlane.f32.xlu0 %v15
    %v17 = vpop.xlane.xlu0 %16
    %v18 = vsub.f32 %v12, %v17
    %v19 = vmul.f32 %v18, 1.442695
    %v20 = vpow.pop %v19
    %v21 = vsel %vm14, %v20, 0.0
    %22 = vadd.xlane.f32.xlu0 %v21
    %v23 = vpop.xlane.xlu0 %22
    %v24 = vlaneseq
    %v25 = vand.u32 %v24, 127
    %26 = vset.pattern.permute.xlu0 0
    %27 = vperm.xlu0 %26, %v13
    %v28 = vpop.permute.xlu0 %27
    %vm29 = vcmp.eq.s32.totalorder %v25, %v28
    %v30 = vsel %vm29, %v12, 0.0
    %v31 = vsel %vm14, %v30, 0.0
    %32 = vadd.xlane.f32.xlu0 %v31
    %v33 = vpop.xlane.xlu0 %32
    %v34 = vlog2.pop %v23
    %v35 = vmul.f32 %v34, 0.6931472
    %v36 = vadd.f32 %v35, %v17
    %v37 = vsub.f32 %v36, %v33
    %vm38 = vcmask 7168
    %v39 = vsel %vm38, %v37, 0.0
    %40 = vadd.xlane.f32.xlu0 %v39
    %v41 = vpop.xlane.xlu0 %40
    %v42 = vrot.slane %v41, 4
    %v43 = vadd.f32 %v41, %v42
    %v44 = vrot.slane %v43, 2
    %v45 = vadd.f32 %v43, %v44
    %v46 = vrot.slane %v45, 1
    %v47 = vadd.f32 %v45, %v46
    %s48 = vtos %v47
    %v49 = vstv %s48
    %vm50 = vcmask 0
    %51 = vst.msk [vmem:[#allocation2] sm:$0x1] %vm50, %v49
    // Predicated region
    $region10: #{tpu_custom_call.1} parent=1 // pred_check
      _
    $region11: #{tpu_custom_call.1} parent=1 // pred_check_branch
      %53 = sbr.rel (0) target = $region13
    $region12: #{tpu_custom_call.1} parent=1 // pred_region
      %s55 = ssub.s32 16, 16
      %56 = vsyncadd [#allocation3], %s55
      %s58 = sshll.u32 [#allocation2], 4
      %s59 = int_to_ptr.vmem [resolvable:$true] %s58
      %61 = dma.vmem_to_hbm [thread:$0]  %s59, 16, %s2, [#allocation3]
    $region13: #{tpu_custom_call.1} parent=1 // pred_fallthru
      _
    // Predicated region
    $region14: #{tpu_custom_call.1} parent=1 // pred_check
      _
    $region15: #{tpu_custom_call.1} parent=1 // pred_check_branch
      %63 = sbr.rel (0) target = $region17
    $region16: #{tpu_custom_call.1} parent=1 // pred_region
      %64 = dma.done [#allocation3], 16
    $region17: #{tpu_custom_call.1} parent=1 // pred_fallthru
      _
    %65 = vsyncpa [#allocation3], 1

</llo_original>
